<compile_context>
chip_gen: v6e
topology: v6e:2x2x1
jax: 0.10.0
libtpu: 0.0.40
codegen_flags: <defaults>
</compile_context>

<pallas_src>
import math
from functools import partial

import jax
import jax.numpy as jnp
from jax.experimental import pallas as pl
from jax.experimental.pallas import tpu as pltpu

_LANE = 128
_SUBLANE = 8
_TARGET_BLOCK_ROWS = 256          # sweep 128..512; 256 is safe on v5e VMEM / vreg pressure
_HALLEY_ITERS = 5

_LOG_2PI2 = math.log(2.0) + 2.0 * math.log(math.pi)   # log(2*pi^2)
_LOG_2PI = math.log(2.0 * math.pi)
# exp-shift (+1) + log(2*pi^2) - 0.5*log(2*pi), folded into one literal
_LOG_F_CONST = 1.0 + _LOG_2PI2 - 0.5 * _LOG_2PI


def _recip(x):
    """EUP approximate reciprocal + one Newton-Raphson refinement (~full f32)."""
    r = pl.reciprocal(x, approx=True)
    return r * (2.0 - x * r)


def _bingham_kernel(x_ref, out_ref):
    # x_ref: (11, block_rows, 128) component-major, each slice a lane-dense f32 tile:
    #   [0:4]  mode quaternion q, [4:7] lambda (<= 0), [7:11] target quaternion t
    q0 = x_ref[0]
    q1 = x_ref[1]
    q2 = x_ref[2]
    q3 = x_ref[3]
    # clamp lambdas to <= 0 (Bingham requirement); keeps the saddle solve valid.
    l1 = jnp.minimum(x_ref[4], 0.0)
    l2 = jnp.minimum(x_ref[5], 0.0)
    l3 = jnp.minimum(x_ref[6], 0.0)
    t0 = x_ref[7]
    t1 = x_ref[8]
    t2 = x_ref[9]
    t3 = x_ref[10]

    # ---- dispersion axes of the Bingham (columns 2..4 of the left-mult matrix) -----
    # M(q) = [[q0,-q1,-q2,-q3],[q1,q0,-q3,q2],[q2,q3,q0,-q1],[q3,-q2,q1,q0]]
    d1 = -q1 * t0 + q0 * t1 + q3 * t2 - q2 * t3
    d2 = -q2 * t0 - q3 * t1 + q0 * t2 + q1 * t3
    d3 = -q3 * t0 + q2 * t1 - q1 * t2 + q0 * t3
    unnorm = l1 * d1 * d1 + l2 * d2 * d2 + l3 * d3 * d3

    # ---- log normalizing constant F(0, l1, l2, l3) ----------------------------------
    # F = e^s * c(theta + s), theta = (0, -l1, -l2, -l3), shift s = 1 so theta' >= 1.
    th1 = 1.0 - l1
    th2 = 1.0 - l2
    th3 = 1.0 - l3

    # Halley solve of K'(t) = 0.5*(1/(1-t) + sum 1/(th_i - t)) = 1, root in (-1, 0.5].
    # Halley is exact for a single pole, so it converges in 3-4 steps even in the
    # worst (all lambda equal) case; 5 iterations leave a comfortable margin.
    t_hat = jnp.full_like(q0, 0.5)
    for _ in range(_HALLEY_ITERS):
        r0 = pl.reciprocal(1.0 - t_hat, approx=True)
        r1 = pl.reciprocal(th1 - t_hat, approx=True)
        r2 = pl.reciprocal(th2 - t_hat, approx=True)
        r3 = pl.reciprocal(th3 - t_hat, approx=True)
        r0s = r0 * r0
        r1s = r1 * r1
        r2s = r2 * r2
        r3s = r3 * r3
        g = 0.5 * (r0 + r1 + r2 + r3) - 1.0                 # K' - 1
        gp = 0.5 * (r0s + r1s + r2s + r3s)                  # K''
        gpp = r0s * r0 + r1s * r1 + r2s * r2 + r3s * r3     # K'''
        denom = 2.0 * gp * gp - g * gpp
        t_hat = t_hat - 2.0 * g * gp * pl.reciprocal(denom, approx=True)

    # refined reciprocals + one exact Newton polish (removes approx-recip bias)
    s0 = 1.0 - t_hat
    s1 = th1 - t_hat
    s2 = th2 - t_hat
    s3 = th3 - t_hat
    r0 = _recip(s0)
    r1 = _recip(s1)
    r2 = _recip(s2)
    r3 = _recip(s3)
    kp = 0.5 * (r0 + r1 + r2 + r3)
    kpp = 0.5 * (r0 * r0 + r1 * r1 + r2 * r2 + r3 * r3)
    dt = (kp - 1.0) * pl.reciprocal(kpp, approx=True)
    t_hat = t_hat - dt
    s0 = s0 + dt
    s1 = s1 + dt
    s2 = s2 + dt
    s3 = s3 + dt
    # seeded NR refresh: dt is tiny so one step restores full f32 -- no extra EUP pushes
    r0 = r0 * (2.0 - s0 * r0)
    r1 = r1 * (2.0 - s1 * r1)
    r2 = r2 * (2.0 - s2 * r2)
    r3 = r3 * (2.0 - s3 * r3)

    # strength-reduced cumulants: K'' = 0.5*sum r^2, K''' = sum r^3, K'''' = 3*sum r^4
    r0s = r0 * r0
    r1s = r1 * r1
    r2s = r2 * r2
    r3s = r3 * r3
    kpp = 0.5 * (r0s + r1s + r2s + r3s)
    kppp = r0s * r0 + r1s * r1 + r2s * r2 + r3s * r3
    kpppp = 3.0 * (r0s * r0s + r1s * r1s + r2s * r2s + r3s * r3s)

    inv_kpp = _recip(kpp)
    rho3_sq = (kppp * kppp) * (inv_kpp * inv_kpp * inv_kpp)
    rho4 = kpppp * (inv_kpp * inv_kpp)
    t_corr = 0.125 * rho4 - (5.0 / 24.0) * rho3_sq

    # log F = const - 0.5*log(s0 s1 s2 s3 * K'') - 0.5*log(th1 th2 th3) - t_hat + T
    # (pairwise log fusion: 2 EUP logs instead of 3; th-product kept separate so the
    #  fused product cannot overflow f32 for any realistic |lambda|)
    log_f = (_LOG_F_CONST
             - 0.5 * jnp.log(s0 * s1 * s2 * s3 * kpp)
             - 0.5 * jnp.log(th1 * th2 * th3)
             - t_hat + t_corr)

    out_ref[...] = unnorm - log_f


def _round_up(x, m):
    return ((x + m - 1) // m) * m


@partial(jax.jit, static_argnames=("target_block_rows",))
def bingham_log_likelihood(predicted_rotation, predicted_lambda, target, *,
                           target_block_rows=_TARGET_BLOCK_ROWS):
    """Forward pass of the PyTorch module. Returns log_p of shape (N,), float32."""
    q = jnp.asarray(predicted_rotation, jnp.float32).reshape(-1, 4)
    lam = jnp.asarray(predicted_lambda, jnp.float32).reshape(-1, 3)
    tgt = jnp.asarray(target, jnp.float32).reshape(-1, 4)
    n = q.shape[0]

    # ---- adaptive tiling: pad rows only to the sublane multiple, then pick the block --
    rows_needed = max(_SUBLANE, _round_up(-(-n // _LANE), _SUBLANE))
    num_blocks = max(1, -(-rows_needed // target_block_rows))
    if num_blocks == 1 and rows_needed >= 2 * _SUBLANE:
        num_blocks = 2                      # v7x: keep both TensorCores busy
    block_rows = _round_up(-(-rows_needed // num_blocks), _SUBLANE)
    rows = num_blocks * block_rows
    n_pad = rows * _LANE
    pad = n_pad - n

    # ---- single component-major, lane-dense input (11, rows, 128) = (q | lambda | t) --
    # One DMA per grid step instead of three; padded entries (q = t = 0, lam = 0) give
    # finite junk that is sliced away. Under jit the pad/concat/transpose fuse into one
    # HBM pass.
    # TODO(synk): emit component-major tensors upstream to drop this layout pass (v5e).
    packed = jnp.concatenate(
        [jnp.pad(q, ((0, pad), (0, 0))),
         jnp.pad(lam, ((0, pad), (0, 0))),
         jnp.pad(tgt, ((0, pad), (0, 0)))], axis=1)          # (n_pad, 11)
    packed = packed.T.reshape(11, rows, _LANE)

    out = pl.pallas_call(
        _bingham_kernel,
        out_shape=jax.ShapeDtypeStruct((rows, _LANE), jnp.float32),
        grid=(num_blocks,),
        in_specs=[pl.BlockSpec((11, block_rows, _LANE), lambda i: (0, i, 0))],
        out_specs=pl.BlockSpec((block_rows, _LANE), lambda i: (i, 0)),
        compiler_params=pltpu.CompilerParams(dimension_semantics=("parallel",)),
        cost_estimate=pl.CostEstimate(
            flops=260 * n_pad, transcendentals=35 * n_pad, bytes_accessed=48 * n_pad),
    )(packed)

    return out.reshape(-1)[:n]


if __name__ == "__main__":
    key = jax.random.PRNGKey(0)
    k1, k2, k3 = jax.random.split(key, 3)

    n = 256  # batch of quaternions

    # predicted mode quaternions (unit-normalized, as the network head would produce)
    pred_rot = jax.random.normal(k1, (n, 4), dtype=jnp.float32)
    pred_rot = pred_rot / jnp.linalg.norm(pred_rot, axis=-1, keepdims=True)

    # Bingham concentration parameters: lambda_k <= 0
    pred_lambda = -jax.random.uniform(k2, (n, 3), dtype=jnp.float32, minval=1.0, maxval=50.0)

    # target quaternions (unit-normalized ground truth)
    target = jax.random.normal(k3, (n, 4), dtype=jnp.float32)
    target = target / jnp.linalg.norm(target, axis=-1, keepdims=True)

    log_p = bingham_log_likelihood(pred_rot, pred_lambda, target)
    jax.block_until_ready(log_p)

    assert log_p.shape == (n,)
    assert bool(jnp.all(jnp.isfinite(log_p)))
    print("KERNEL_OK")
</pallas_src>

<mosaic_0001>
module attributes {stable_mosaic.version = 11 : i64} {
  func.func @_bingham_kernel(%arg0: i32, %arg1: memref<11x8x128xf32, #tpu.memory_space<vmem>>, %arg2: memref<8x128xf32, #tpu.memory_space<vmem>>) attributes {dimension_semantics = [#tpu.dimension_semantics<parallel>], iteration_bounds = array<i64: 1>, scalar_prefetch = 0 : i64, scratch_operands = 0 : i64, tpu.core_type = #tpu.core_type<tc>, window_params = [{transform_indices = @transform_0, window_bounds = array<i64: 11, 8, 128>}, {transform_indices = @transform_1, window_bounds = array<i64: 8, 128>}]} {
    %c0 = arith.constant 0 : index
    %c0_0 = arith.constant 0 : index
    %c0_1 = arith.constant 0 : index
    %0 = vector.load %arg1[%c0, %c0_0, %c0_1] : memref<11x8x128xf32, #tpu.memory_space<vmem>>, vector<1x8x128xf32>
    %1 = vector.shape_cast %0 : vector<1x8x128xf32> to vector<8x128xf32>
    %c1 = arith.constant 1 : index
    %c0_2 = arith.constant 0 : index
    %c0_3 = arith.constant 0 : index
    %2 = vector.load %arg1[%c1, %c0_2, %c0_3] : memref<11x8x128xf32, #tpu.memory_space<vmem>>, vector<1x8x128xf32>
    %3 = vector.shape_cast %2 : vector<1x8x128xf32> to vector<8x128xf32>
    %c2 = arith.constant 2 : index
    %c0_4 = arith.constant 0 : index
    %c0_5 = arith.constant 0 : index
    %4 = vector.load %arg1[%c2, %c0_4, %c0_5] : memref<11x8x128xf32, #tpu.memory_space<vmem>>, vector<1x8x128xf32>
    %5 = vector.shape_cast %4 : vector<1x8x128xf32> to vector<8x128xf32>
    %c3 = arith.constant 3 : index
    %c0_6 = arith.constant 0 : index
    %c0_7 = arith.constant 0 : index
    %6 = vector.load %arg1[%c3, %c0_6, %c0_7] : memref<11x8x128xf32, #tpu.memory_space<vmem>>, vector<1x8x128xf32>
    %7 = vector.shape_cast %6 : vector<1x8x128xf32> to vector<8x128xf32>
    %c4 = arith.constant 4 : index
    %c0_8 = arith.constant 0 : index
    %c0_9 = arith.constant 0 : index
    %8 = vector.load %arg1[%c4, %c0_8, %c0_9] : memref<11x8x128xf32, #tpu.memory_space<vmem>>, vector<1x8x128xf32>
    %9 = vector.shape_cast %8 : vector<1x8x128xf32> to vector<8x128xf32>
    %cst = arith.constant 0.000000e+00 : f32
    %10 = vector.broadcast %cst : f32 to vector<8x128xf32>
    %11 = arith.minimumf %9, %10 : vector<8x128xf32>
    %c5 = arith.constant 5 : index
    %c0_10 = arith.constant 0 : index
    %c0_11 = arith.constant 0 : index
    %12 = vector.load %arg1[%c5, %c0_10, %c0_11] : memref<11x8x128xf32, #tpu.memory_space<vmem>>, vector<1x8x128xf32>
    %13 = vector.shape_cast %12 : vector<1x8x128xf32> to vector<8x128xf32>
    %cst_12 = arith.constant 0.000000e+00 : f32
    %14 = vector.broadcast %cst_12 : f32 to vector<8x128xf32>
    %15 = arith.minimumf %13, %14 : vector<8x128xf32>
    %c6 = arith.constant 6 : index
    %c0_13 = arith.constant 0 : index
    %c0_14 = arith.constant 0 : index
    %16 = vector.load %arg1[%c6, %c0_13, %c0_14] : memref<11x8x128xf32, #tpu.memory_space<vmem>>, vector<1x8x128xf32>
    %17 = vector.shape_cast %16 : vector<1x8x128xf32> to vector<8x128xf32>
    %cst_15 = arith.constant 0.000000e+00 : f32
    %18 = vector.broadcast %cst_15 : f32 to vector<8x128xf32>
    %19 = arith.minimumf %17, %18 : vector<8x128xf32>
    %c7 = arith.constant 7 : index
    %c0_16 = arith.constant 0 : index
    %c0_17 = arith.constant 0 : index
    %20 = vector.load %arg1[%c7, %c0_16, %c0_17] : memref<11x8x128xf32, #tpu.memory_space<vmem>>, vector<1x8x128xf32>
    %21 = vector.shape_cast %20 : vector<1x8x128xf32> to vector<8x128xf32>
    %c8 = arith.constant 8 : index
    %c0_18 = arith.constant 0 : index
    %c0_19 = arith.constant 0 : index
    %22 = vector.load %arg1[%c8, %c0_18, %c0_19] : memref<11x8x128xf32, #tpu.memory_space<vmem>>, vector<1x8x128xf32>
    %23 = vector.shape_cast %22 : vector<1x8x128xf32> to vector<8x128xf32>
    %c9 = arith.constant 9 : index
    %c0_20 = arith.constant 0 : index
    %c0_21 = arith.constant 0 : index
    %24 = vector.load %arg1[%c9, %c0_20, %c0_21] : memref<11x8x128xf32, #tpu.memory_space<vmem>>, vector<1x8x128xf32>
    %25 = vector.shape_cast %24 : vector<1x8x128xf32> to vector<8x128xf32>
    %c10 = arith.constant 10 : index
    %c0_22 = arith.constant 0 : index
    %c0_23 = arith.constant 0 : index
    %26 = vector.load %arg1[%c10, %c0_22, %c0_23] : memref<11x8x128xf32, #tpu.memory_space<vmem>>, vector<1x8x128xf32>
    %27 = vector.shape_cast %26 : vector<1x8x128xf32> to vector<8x128xf32>
    %cst_24 = arith.constant 0.000000e+00 : f32
    %28 = vector.broadcast %cst_24 : f32 to vector<8x128xf32>
    %29 = arith.subf %28, %3 : vector<8x128xf32>
    %30 = arith.mulf %29, %21 : vector<8x128xf32>
    %31 = arith.mulf %1, %23 : vector<8x128xf32>
    %32 = arith.addf %30, %31 : vector<8x128xf32>
    %33 = arith.mulf %7, %25 : vector<8x128xf32>
    %34 = arith.addf %32, %33 : vector<8x128xf32>
    %35 = arith.mulf %5, %27 : vector<8x128xf32>
    %36 = arith.subf %34, %35 : vector<8x128xf32>
    %cst_25 = arith.constant 0.000000e+00 : f32
    %37 = vector.broadcast %cst_25 : f32 to vector<8x128xf32>
    %38 = arith.subf %37, %5 : vector<8x128xf32>
    %39 = arith.mulf %38, %21 : vector<8x128xf32>
    %40 = arith.mulf %7, %23 : vector<8x128xf32>
    %41 = arith.subf %39, %40 : vector<8x128xf32>
    %42 = arith.mulf %1, %25 : vector<8x128xf32>
    %43 = arith.addf %41, %42 : vector<8x128xf32>
    %44 = arith.mulf %3, %27 : vector<8x128xf32>
    %45 = arith.addf %43, %44 : vector<8x128xf32>
    %cst_26 = arith.constant 0.000000e+00 : f32
    %46 = vector.broadcast %cst_26 : f32 to vector<8x128xf32>
    %47 = arith.subf %46, %7 : vector<8x128xf32>
    %48 = arith.mulf %47, %21 : vector<8x128xf32>
    %49 = arith.mulf %5, %23 : vector<8x128xf32>
    %50 = arith.addf %48, %49 : vector<8x128xf32>
    %51 = arith.mulf %3, %25 : vector<8x128xf32>
    %52 = arith.subf %50, %51 : vector<8x128xf32>
    %53 = arith.mulf %1, %27 : vector<8x128xf32>
    %54 = arith.addf %52, %53 : vector<8x128xf32>
    %55 = arith.mulf %11, %36 : vector<8x128xf32>
    %56 = arith.mulf %55, %36 : vector<8x128xf32>
    %57 = arith.mulf %15, %45 : vector<8x128xf32>
    %58 = arith.mulf %57, %45 : vector<8x128xf32>
    %59 = arith.addf %56, %58 : vector<8x128xf32>
    %60 = arith.mulf %19, %54 : vector<8x128xf32>
    %61 = arith.mulf %60, %54 : vector<8x128xf32>
    %62 = arith.addf %59, %61 : vector<8x128xf32>
    %cst_27 = arith.constant 1.000000e+00 : f32
    %63 = vector.broadcast %cst_27 : f32 to vector<8x128xf32>
    %64 = arith.subf %63, %11 : vector<8x128xf32>
    %cst_28 = arith.constant 1.000000e+00 : f32
    %65 = vector.broadcast %cst_28 : f32 to vector<8x128xf32>
    %66 = arith.subf %65, %15 : vector<8x128xf32>
    %cst_29 = arith.constant 1.000000e+00 : f32
    %67 = vector.broadcast %cst_29 : f32 to vector<8x128xf32>
    %68 = arith.subf %67, %19 : vector<8x128xf32>
    %cst_30 = arith.constant 5.000000e-01 : f32
    %69 = vector.broadcast %cst_30 : f32 to vector<8x128xf32>
    %cst_31 = arith.constant 1.000000e+00 : f32
    %70 = vector.broadcast %cst_31 : f32 to vector<8x128xf32>
    %71 = arith.subf %70, %69 : vector<8x128xf32>
    %72 = tpu.reciprocal %71 {approx = true} : vector<8x128xf32> -> vector<8x128xf32>
    %73 = arith.subf %64, %69 : vector<8x128xf32>
    %74 = tpu.reciprocal %73 {approx = true} : vector<8x128xf32> -> vector<8x128xf32>
    %75 = arith.subf %66, %69 : vector<8x128xf32>
    %76 = tpu.reciprocal %75 {approx = true} : vector<8x128xf32> -> vector<8x128xf32>
    %77 = arith.subf %68, %69 : vector<8x128xf32>
    %78 = tpu.reciprocal %77 {approx = true} : vector<8x128xf32> -> vector<8x128xf32>
    %79 = arith.mulf %72, %72 : vector<8x128xf32>
    %80 = arith.mulf %74, %74 : vector<8x128xf32>
    %81 = arith.mulf %76, %76 : vector<8x128xf32>
    %82 = arith.mulf %78, %78 : vector<8x128xf32>
    %83 = arith.addf %72, %74 : vector<8x128xf32>
    %84 = arith.addf %83, %76 : vector<8x128xf32>
    %85 = arith.addf %84, %78 : vector<8x128xf32>
    %cst_32 = arith.constant 5.000000e-01 : f32
    %86 = vector.broadcast %cst_32 : f32 to vector<8x128xf32>
    %87 = arith.mulf %86, %85 : vector<8x128xf32>
    %cst_33 = arith.constant 1.000000e+00 : f32
    %88 = vector.broadcast %cst_33 : f32 to vector<8x128xf32>
    %89 = arith.subf %87, %88 : vector<8x128xf32>
    %90 = arith.addf %79, %80 : vector<8x128xf32>
    %91 = arith.addf %90, %81 : vector<8x128xf32>
    %92 = arith.addf %91, %82 : vector<8x128xf32>
    %cst_34 = arith.constant 5.000000e-01 : f32
    %93 = vector.broadcast %cst_34 : f32 to vector<8x128xf32>
    %94 = arith.mulf %93, %92 : vector<8x128xf32>
    %95 = arith.mulf %79, %72 : vector<8x128xf32>
    %96 = arith.mulf %80, %74 : vector<8x128xf32>
    %97 = arith.addf %95, %96 : vector<8x128xf32>
    %98 = arith.mulf %81, %76 : vector<8x128xf32>
    %99 = arith.addf %97, %98 : vector<8x128xf32>
    %100 = arith.mulf %82, %78 : vector<8x128xf32>
    %101 = arith.addf %99, %100 : vector<8x128xf32>
    %cst_35 = arith.constant 2.000000e+00 : f32
    %102 = vector.broadcast %cst_35 : f32 to vector<8x128xf32>
    %103 = arith.mulf %102, %94 : vector<8x128xf32>
    %104 = arith.mulf %103, %94 : vector<8x128xf32>
    %105 = arith.mulf %89, %101 : vector<8x128xf32>
    %106 = arith.subf %104, %105 : vector<8x128xf32>
    %cst_36 = arith.constant 2.000000e+00 : f32
    %107 = vector.broadcast %cst_36 : f32 to vector<8x128xf32>
    %108 = arith.mulf %107, %89 : vector<8x128xf32>
    %109 = arith.mulf %108, %94 : vector<8x128xf32>
    %110 = tpu.reciprocal %106 {approx = true} : vector<8x128xf32> -> vector<8x128xf32>
    %111 = arith.mulf %109, %110 : vector<8x128xf32>
    %112 = arith.subf %69, %111 : vector<8x128xf32>
    %cst_37 = arith.constant 1.000000e+00 : f32
    %113 = vector.broadcast %cst_37 : f32 to vector<8x128xf32>
    %114 = arith.subf %113, %112 : vector<8x128xf32>
    %115 = tpu.reciprocal %114 {approx = true} : vector<8x128xf32> -> vector<8x128xf32>
    %116 = arith.subf %64, %112 : vector<8x128xf32>
    %117 = tpu.reciprocal %116 {approx = true} : vector<8x128xf32> -> vector<8x128xf32>
    %118 = arith.subf %66, %112 : vector<8x128xf32>
    %119 = tpu.reciprocal %118 {approx = true} : vector<8x128xf32> -> vector<8x128xf32>
    %120 = arith.subf %68, %112 : vector<8x128xf32>
    %121 = tpu.reciprocal %120 {approx = true} : vector<8x128xf32> -> vector<8x128xf32>
    %122 = arith.mulf %115, %115 : vector<8x128xf32>
    %123 = arith.mulf %117, %117 : vector<8x128xf32>
    %124 = arith.mulf %119, %119 : vector<8x128xf32>
    %125 = arith.mulf %121, %121 : vector<8x128xf32>
    %126 = arith.addf %115, %117 : vector<8x128xf32>
    %127 = arith.addf %126, %119 : vector<8x128xf32>
    %128 = arith.addf %127, %121 : vector<8x128xf32>
    %cst_38 = arith.constant 5.000000e-01 : f32
    %129 = vector.broadcast %cst_38 : f32 to vector<8x128xf32>
    %130 = arith.mulf %129, %128 : vector<8x128xf32>
    %cst_39 = arith.constant 1.000000e+00 : f32
    %131 = vector.broadcast %cst_39 : f32 to vector<8x128xf32>
    %132 = arith.subf %130, %131 : vector<8x128xf32>
    %133 = arith.addf %122, %123 : vector<8x128xf32>
    %134 = arith.addf %133, %124 : vector<8x128xf32>
    %135 = arith.addf %134, %125 : vector<8x128xf32>
    %cst_40 = arith.constant 5.000000e-01 : f32
    %136 = vector.broadcast %cst_40 : f32 to vector<8x128xf32>
    %137 = arith.mulf %136, %135 : vector<8x128xf32>
    %138 = arith.mulf %122, %115 : vector<8x128xf32>
    %139 = arith.mulf %123, %117 : vector<8x128xf32>
    %140 = arith.addf %138, %139 : vector<8x128xf32>
    %141 = arith.mulf %124, %119 : vector<8x128xf32>
    %142 = arith.addf %140, %141 : vector<8x128xf32>
    %143 = arith.mulf %125, %121 : vector<8x128xf32>
    %144 = arith.addf %142, %143 : vector<8x128xf32>
    %cst_41 = arith.constant 2.000000e+00 : f32
    %145 = vector.broadcast %cst_41 : f32 to vector<8x128xf32>
    %146 = arith.mulf %145, %137 : vector<8x128xf32>
    %147 = arith.mulf %146, %137 : vector<8x128xf32>
    %148 = arith.mulf %132, %144 : vector<8x128xf32>
    %149 = arith.subf %147, %148 : vector<8x128xf32>
    %cst_42 = arith.constant 2.000000e+00 : f32
    %150 = vector.broadcast %cst_42 : f32 to vector<8x128xf32>
    %151 = arith.mulf %150, %132 : vector<8x128xf32>
    %152 = arith.mulf %151, %137 : vector<8x128xf32>
    %153 = tpu.reciprocal %149 {approx = true} : vector<8x128xf32> -> vector<8x128xf32>
    %154 = arith.mulf %152, %153 : vector<8x128xf32>
    %155 = arith.subf %112, %154 : vector<8x128xf32>
    %cst_43 = arith.constant 1.000000e+00 : f32
    %156 = vector.broadcast %cst_43 : f32 to vector<8x128xf32>
    %157 = arith.subf %156, %155 : vector<8x128xf32>
    %158 = tpu.reciprocal %157 {approx = true} : vector<8x128xf32> -> vector<8x128xf32>
    %159 = arith.subf %64, %155 : vector<8x128xf32>
    %160 = tpu.reciprocal %159 {approx = true} : vector<8x128xf32> -> vector<8x128xf32>
    %161 = arith.subf %66, %155 : vector<8x128xf32>
    %162 = tpu.reciprocal %161 {approx = true} : vector<8x128xf32> -> vector<8x128xf32>
    %163 = arith.subf %68, %155 : vector<8x128xf32>
    %164 = tpu.reciprocal %163 {approx = true} : vector<8x128xf32> -> vector<8x128xf32>
    %165 = arith.mulf %158, %158 : vector<8x128xf32>
    %166 = arith.mulf %160, %160 : vector<8x128xf32>
    %167 = arith.mulf %162, %162 : vector<8x128xf32>
    %168 = arith.mulf %164, %164 : vector<8x128xf32>
    %169 = arith.addf %158, %160 : vector<8x128xf32>
    %170 = arith.addf %169, %162 : vector<8x128xf32>
    %171 = arith.addf %170, %164 : vector<8x128xf32>
    %cst_44 = arith.constant 5.000000e-01 : f32
    %172 = vector.broadcast %cst_44 : f32 to vector<8x128xf32>
    %173 = arith.mulf %172, %171 : vector<8x128xf32>
    %cst_45 = arith.constant 1.000000e+00 : f32
    %174 = vector.broadcast %cst_45 : f32 to vector<8x128xf32>
    %175 = arith.subf %173, %174 : vector<8x128xf32>
    %176 = arith.addf %165, %166 : vector<8x128xf32>
    %177 = arith.addf %176, %167 : vector<8x128xf32>
    %178 = arith.addf %177, %168 : vector<8x128xf32>
    %cst_46 = arith.constant 5.000000e-01 : f32
    %179 = vector.broadcast %cst_46 : f32 to vector<8x128xf32>
    %180 = arith.mulf %179, %178 : vector<8x128xf32>
    %181 = arith.mulf %165, %158 : vector<8x128xf32>
    %182 = arith.mulf %166, %160 : vector<8x128xf32>
    %183 = arith.addf %181, %182 : vector<8x128xf32>
    %184 = arith.mulf %167, %162 : vector<8x128xf32>
    %185 = arith.addf %183, %184 : vector<8x128xf32>
    %186 = arith.mulf %168, %164 : vector<8x128xf32>
    %187 = arith.addf %185, %186 : vector<8x128xf32>
    %cst_47 = arith.constant 2.000000e+00 : f32
    %188 = vector.broadcast %cst_47 : f32 to vector<8x128xf32>
    %189 = arith.mulf %188, %180 : vector<8x128xf32>
    %190 = arith.mulf %189, %180 : vector<8x128xf32>
    %191 = arith.mulf %175, %187 : vector<8x128xf32>
    %192 = arith.subf %190, %191 : vector<8x128xf32>
    %cst_48 = arith.constant 2.000000e+00 : f32
    %193 = vector.broadcast %cst_48 : f32 to vector<8x128xf32>
    %194 = arith.mulf %193, %175 : vector<8x128xf32>
    %195 = arith.mulf %194, %180 : vector<8x128xf32>
    %196 = tpu.reciprocal %192 {approx = true} : vector<8x128xf32> -> vector<8x128xf32>
    %197 = arith.mulf %195, %196 : vector<8x128xf32>
    %198 = arith.subf %155, %197 : vector<8x128xf32>
    %cst_49 = arith.constant 1.000000e+00 : f32
    %199 = vector.broadcast %cst_49 : f32 to vector<8x128xf32>
    %200 = arith.subf %199, %198 : vector<8x128xf32>
    %201 = tpu.reciprocal %200 {approx = true} : vector<8x128xf32> -> vector<8x128xf32>
    %202 = arith.subf %64, %198 : vector<8x128xf32>
    %203 = tpu.reciprocal %202 {approx = true} : vector<8x128xf32> -> vector<8x128xf32>
    %204 = arith.subf %66, %198 : vector<8x128xf32>
    %205 = tpu.reciprocal %204 {approx = true} : vector<8x128xf32> -> vector<8x128xf32>
    %206 = arith.subf %68, %198 : vector<8x128xf32>
    %207 = tpu.reciprocal %206 {approx = true} : vector<8x128xf32> -> vector<8x128xf32>
    %208 = arith.mulf %201, %201 : vector<8x128xf32>
    %209 = arith.mulf %203, %203 : vector<8x128xf32>
    %210 = arith.mulf %205, %205 : vector<8x128xf32>
    %211 = arith.mulf %207, %207 : vector<8x128xf32>
    %212 = arith.addf %201, %203 : vector<8x128xf32>
    %213 = arith.addf %212, %205 : vector<8x128xf32>
    %214 = arith.addf %213, %207 : vector<8x128xf32>
    %cst_50 = arith.constant 5.000000e-01 : f32
    %215 = vector.broadcast %cst_50 : f32 to vector<8x128xf32>
    %216 = arith.mulf %215, %214 : vector<8x128xf32>
    %cst_51 = arith.constant 1.000000e+00 : f32
    %217 = vector.broadcast %cst_51 : f32 to vector<8x128xf32>
    %218 = arith.subf %216, %217 : vector<8x128xf32>
    %219 = arith.addf %208, %209 : vector<8x128xf32>
    %220 = arith.addf %219, %210 : vector<8x128xf32>
    %221 = arith.addf %220, %211 : vector<8x128xf32>
    %cst_52 = arith.constant 5.000000e-01 : f32
    %222 = vector.broadcast %cst_52 : f32 to vector<8x128xf32>
    %223 = arith.mulf %222, %221 : vector<8x128xf32>
    %224 = arith.mulf %208, %201 : vector<8x128xf32>
    %225 = arith.mulf %209, %203 : vector<8x128xf32>
    %226 = arith.addf %224, %225 : vector<8x128xf32>
    %227 = arith.mulf %210, %205 : vector<8x128xf32>
    %228 = arith.addf %226, %227 : vector<8x128xf32>
    %229 = arith.mulf %211, %207 : vector<8x128xf32>
    %230 = arith.addf %228, %229 : vector<8x128xf32>
    %cst_53 = arith.constant 2.000000e+00 : f32
    %231 = vector.broadcast %cst_53 : f32 to vector<8x128xf32>
    %232 = arith.mulf %231, %223 : vector<8x128xf32>
    %233 = arith.mulf %232, %223 : vector<8x128xf32>
    %234 = arith.mulf %218, %230 : vector<8x128xf32>
    %235 = arith.subf %233, %234 : vector<8x128xf32>
    %cst_54 = arith.constant 2.000000e+00 : f32
    %236 = vector.broadcast %cst_54 : f32 to vector<8x128xf32>
    %237 = arith.mulf %236, %218 : vector<8x128xf32>
    %238 = arith.mulf %237, %223 : vector<8x128xf32>
    %239 = tpu.reciprocal %235 {approx = true} : vector<8x128xf32> -> vector<8x128xf32>
    %240 = arith.mulf %238, %239 : vector<8x128xf32>
    %241 = arith.subf %198, %240 : vector<8x128xf32>
    %cst_55 = arith.constant 1.000000e+00 : f32
    %242 = vector.broadcast %cst_55 : f32 to vector<8x128xf32>
    %243 = arith.subf %242, %241 : vector<8x128xf32>
    %244 = tpu.reciprocal %243 {approx = true} : vector<8x128xf32> -> vector<8x128xf32>
    %245 = arith.subf %64, %241 : vector<8x128xf32>
    %246 = tpu.reciprocal %245 {approx = true} : vector<8x128xf32> -> vector<8x128xf32>
    %247 = arith.subf %66, %241 : vector<8x128xf32>
    %248 = tpu.reciprocal %247 {approx = true} : vector<8x128xf32> -> vector<8x128xf32>
    %249 = arith.subf %68, %241 : vector<8x128xf32>
    %250 = tpu.reciprocal %249 {approx = true} : vector<8x128xf32> -> vector<8x128xf32>
    %251 = arith.mulf %244, %244 : vector<8x128xf32>
    %252 = arith.mulf %246, %246 : vector<8x128xf32>
    %253 = arith.mulf %248, %248 : vector<8x128xf32>
    %254 = arith.mulf %250, %250 : vector<8x128xf32>
    %255 = arith.addf %244, %246 : vector<8x128xf32>
    %256 = arith.addf %255, %248 : vector<8x128xf32>
    %257 = arith.addf %256, %250 : vector<8x128xf32>
    %cst_56 = arith.constant 5.000000e-01 : f32
    %258 = vector.broadcast %cst_56 : f32 to vector<8x128xf32>
    %259 = arith.mulf %258, %257 : vector<8x128xf32>
    %cst_57 = arith.constant 1.000000e+00 : f32
    %260 = vector.broadcast %cst_57 : f32 to vector<8x128xf32>
    %261 = arith.subf %259, %260 : vector<8x128xf32>
    %262 = arith.addf %251, %252 : vector<8x128xf32>
    %263 = arith.addf %262, %253 : vector<8x128xf32>
    %264 = arith.addf %263, %254 : vector<8x128xf32>
    %cst_58 = arith.constant 5.000000e-01 : f32
    %265 = vector.broadcast %cst_58 : f32 to vector<8x128xf32>
    %266 = arith.mulf %265, %264 : vector<8x128xf32>
    %267 = arith.mulf %251, %244 : vector<8x128xf32>
    %268 = arith.mulf %252, %246 : vector<8x128xf32>
    %269 = arith.addf %267, %268 : vector<8x128xf32>
    %270 = arith.mulf %253, %248 : vector<8x128xf32>
    %271 = arith.addf %269, %270 : vector<8x128xf32>
    %272 = arith.mulf %254, %250 : vector<8x128xf32>
    %273 = arith.addf %271, %272 : vector<8x128xf32>
    %cst_59 = arith.constant 2.000000e+00 : f32
    %274 = vector.broadcast %cst_59 : f32 to vector<8x128xf32>
    %275 = arith.mulf %274, %266 : vector<8x128xf32>
    %276 = arith.mulf %275, %266 : vector<8x128xf32>
    %277 = arith.mulf %261, %273 : vector<8x128xf32>
    %278 = arith.subf %276, %277 : vector<8x128xf32>
    %cst_60 = arith.constant 2.000000e+00 : f32
    %279 = vector.broadcast %cst_60 : f32 to vector<8x128xf32>
    %280 = arith.mulf %279, %261 : vector<8x128xf32>
    %281 = arith.mulf %280, %266 : vector<8x128xf32>
    %282 = tpu.reciprocal %278 {approx = true} : vector<8x128xf32> -> vector<8x128xf32>
    %283 = arith.mulf %281, %282 : vector<8x128xf32>
    %284 = arith.subf %241, %283 : vector<8x128xf32>
    %cst_61 = arith.constant 1.000000e+00 : f32
    %285 = vector.broadcast %cst_61 : f32 to vector<8x128xf32>
    %286 = arith.subf %285, %284 : vector<8x128xf32>
    %287 = arith.subf %64, %284 : vector<8x128xf32>
    %288 = arith.subf %66, %284 : vector<8x128xf32>
    %289 = arith.subf %68, %284 : vector<8x128xf32>
    %290 = tpu.reciprocal %286 {approx = true} : vector<8x128xf32> -> vector<8x128xf32>
    %291 = arith.mulf %286, %290 : vector<8x128xf32>
    %cst_62 = arith.constant 2.000000e+00 : f32
    %292 = vector.broadcast %cst_62 : f32 to vector<8x128xf32>
    %293 = arith.subf %292, %291 : vector<8x128xf32>
    %294 = arith.mulf %290, %293 : vector<8x128xf32>
    %295 = tpu.reciprocal %287 {approx = true} : vector<8x128xf32> -> vector<8x128xf32>
    %296 = arith.mulf %287, %295 : vector<8x128xf32>
    %cst_63 = arith.constant 2.000000e+00 : f32
    %297 = vector.broadcast %cst_63 : f32 to vector<8x128xf32>
    %298 = arith.subf %297, %296 : vector<8x128xf32>
    %299 = arith.mulf %295, %298 : vector<8x128xf32>
    %300 = tpu.reciprocal %288 {approx = true} : vector<8x128xf32> -> vector<8x128xf32>
    %301 = arith.mulf %288, %300 : vector<8x128xf32>
    %cst_64 = arith.constant 2.000000e+00 : f32
    %302 = vector.broadcast %cst_64 : f32 to vector<8x128xf32>
    %303 = arith.subf %302, %301 : vector<8x128xf32>
    %304 = arith.mulf %300, %303 : vector<8x128xf32>
    %305 = tpu.reciprocal %289 {approx = true} : vector<8x128xf32> -> vector<8x128xf32>
    %306 = arith.mulf %289, %305 : vector<8x128xf32>
    %cst_65 = arith.constant 2.000000e+00 : f32
    %307 = vector.broadcast %cst_65 : f32 to vector<8x128xf32>
    %308 = arith.subf %307, %306 : vector<8x128xf32>
    %309 = arith.mulf %305, %308 : vector<8x128xf32>
    %310 = arith.addf %294, %299 : vector<8x128xf32>
    %311 = arith.addf %310, %304 : vector<8x128xf32>
    %312 = arith.addf %311, %309 : vector<8x128xf32>
    %cst_66 = arith.constant 5.000000e-01 : f32
    %313 = vector.broadcast %cst_66 : f32 to vector<8x128xf32>
    %314 = arith.mulf %313, %312 : vector<8x128xf32>
    %315 = arith.mulf %294, %294 : vector<8x128xf32>
    %316 = arith.mulf %299, %299 : vector<8x128xf32>
    %317 = arith.addf %315, %316 : vector<8x128xf32>
    %318 = arith.mulf %304, %304 : vector<8x128xf32>
    %319 = arith.addf %317, %318 : vector<8x128xf32>
    %320 = arith.mulf %309, %309 : vector<8x128xf32>
    %321 = arith.addf %319, %320 : vector<8x128xf32>
    %cst_67 = arith.constant 5.000000e-01 : f32
    %322 = vector.broadcast %cst_67 : f32 to vector<8x128xf32>
    %323 = arith.mulf %322, %321 : vector<8x128xf32>
    %cst_68 = arith.constant 1.000000e+00 : f32
    %324 = vector.broadcast %cst_68 : f32 to vector<8x128xf32>
    %325 = arith.subf %314, %324 : vector<8x128xf32>
    %326 = tpu.reciprocal %323 {approx = true} : vector<8x128xf32> -> vector<8x128xf32>
    %327 = arith.mulf %325, %326 : vector<8x128xf32>
    %328 = arith.subf %284, %327 : vector<8x128xf32>
    %329 = arith.addf %286, %327 : vector<8x128xf32>
    %330 = arith.addf %287, %327 : vector<8x128xf32>
    %331 = arith.addf %288, %327 : vector<8x128xf32>
    %332 = arith.addf %289, %327 : vector<8x128xf32>
    %333 = arith.mulf %329, %294 : vector<8x128xf32>
    %cst_69 = arith.constant 2.000000e+00 : f32
    %334 = vector.broadcast %cst_69 : f32 to vector<8x128xf32>
    %335 = arith.subf %334, %333 : vector<8x128xf32>
    %336 = arith.mulf %294, %335 : vector<8x128xf32>
    %337 = arith.mulf %330, %299 : vector<8x128xf32>
    %cst_70 = arith.constant 2.000000e+00 : f32
    %338 = vector.broadcast %cst_70 : f32 to vector<8x128xf32>
    %339 = arith.subf %338, %337 : vector<8x128xf32>
    %340 = arith.mulf %299, %339 : vector<8x128xf32>
    %341 = arith.mulf %331, %304 : vector<8x128xf32>
    %cst_71 = arith.constant 2.000000e+00 : f32
    %342 = vector.broadcast %cst_71 : f32 to vector<8x128xf32>
    %343 = arith.subf %342, %341 : vector<8x128xf32>
    %344 = arith.mulf %304, %343 : vector<8x128xf32>
    %345 = arith.mulf %332, %309 : vector<8x128xf32>
    %cst_72 = arith.constant 2.000000e+00 : f32
    %346 = vector.broadcast %cst_72 : f32 to vector<8x128xf32>
    %347 = arith.subf %346, %345 : vector<8x128xf32>
    %348 = arith.mulf %309, %347 : vector<8x128xf32>
    %349 = arith.mulf %336, %336 : vector<8x128xf32>
    %350 = arith.mulf %340, %340 : vector<8x128xf32>
    %351 = arith.mulf %344, %344 : vector<8x128xf32>
    %352 = arith.mulf %348, %348 : vector<8x128xf32>
    %353 = arith.addf %349, %350 : vector<8x128xf32>
    %354 = arith.addf %353, %351 : vector<8x128xf32>
    %355 = arith.addf %354, %352 : vector<8x128xf32>
    %cst_73 = arith.constant 5.000000e-01 : f32
    %356 = vector.broadcast %cst_73 : f32 to vector<8x128xf32>
    %357 = arith.mulf %356, %355 : vector<8x128xf32>
    %358 = arith.mulf %349, %336 : vector<8x128xf32>
    %359 = arith.mulf %350, %340 : vector<8x128xf32>
    %360 = arith.addf %358, %359 : vector<8x128xf32>
    %361 = arith.mulf %351, %344 : vector<8x128xf32>
    %362 = arith.addf %360, %361 : vector<8x128xf32>
    %363 = arith.mulf %352, %348 : vector<8x128xf32>
    %364 = arith.addf %362, %363 : vector<8x128xf32>
    %365 = arith.mulf %349, %349 : vector<8x128xf32>
    %366 = arith.mulf %350, %350 : vector<8x128xf32>
    %367 = arith.addf %365, %366 : vector<8x128xf32>
    %368 = arith.mulf %351, %351 : vector<8x128xf32>
    %369 = arith.addf %367, %368 : vector<8x128xf32>
    %370 = arith.mulf %352, %352 : vector<8x128xf32>
    %371 = arith.addf %369, %370 : vector<8x128xf32>
    %cst_74 = arith.constant 3.000000e+00 : f32
    %372 = vector.broadcast %cst_74 : f32 to vector<8x128xf32>
    %373 = arith.mulf %372, %371 : vector<8x128xf32>
    %374 = tpu.reciprocal %357 {approx = true} : vector<8x128xf32> -> vector<8x128xf32>
    %375 = arith.mulf %357, %374 : vector<8x128xf32>
    %cst_75 = arith.constant 2.000000e+00 : f32
    %376 = vector.broadcast %cst_75 : f32 to vector<8x128xf32>
    %377 = arith.subf %376, %375 : vector<8x128xf32>
    %378 = arith.mulf %374, %377 : vector<8x128xf32>
    %379 = arith.mulf %364, %364 : vector<8x128xf32>
    %380 = arith.mulf %378, %378 : vector<8x128xf32>
    %381 = arith.mulf %380, %378 : vector<8x128xf32>
    %382 = arith.mulf %379, %381 : vector<8x128xf32>
    %383 = arith.mulf %378, %378 : vector<8x128xf32>
    %384 = arith.mulf %373, %383 : vector<8x128xf32>
    %cst_76 = arith.constant 1.250000e-01 : f32
    %385 = vector.broadcast %cst_76 : f32 to vector<8x128xf32>
    %386 = arith.mulf %385, %384 : vector<8x128xf32>
    %cst_77 = arith.constant 0.208333328 : f32
    %387 = vector.broadcast %cst_77 : f32 to vector<8x128xf32>
    %388 = arith.mulf %387, %382 : vector<8x128xf32>
    %389 = arith.subf %386, %388 : vector<8x128xf32>
    %390 = arith.mulf %329, %330 : vector<8x128xf32>
    %391 = arith.mulf %390, %331 : vector<8x128xf32>
    %392 = arith.mulf %391, %332 : vector<8x128xf32>
    %393 = arith.mulf %392, %357 : vector<8x128xf32>
    %394 = math.log %393 : vector<8x128xf32>
    %cst_78 = arith.constant 5.000000e-01 : f32
    %395 = vector.broadcast %cst_78 : f32 to vector<8x128xf32>
    %396 = arith.mulf %395, %394 : vector<8x128xf32>
    %cst_79 = arith.constant 3.06366849 : f32
    %397 = vector.broadcast %cst_79 : f32 to vector<8x128xf32>
    %398 = arith.subf %397, %396 : vector<8x128xf32>
    %399 = arith.mulf %64, %66 : vector<8x128xf32>
    %400 = arith.mulf %399, %68 : vector<8x128xf32>
    %401 = math.log %400 : vector<8x128xf32>
    %cst_80 = arith.constant 5.000000e-01 : f32
    %402 = vector.broadcast %cst_80 : f32 to vector<8x128xf32>
    %403 = arith.mulf %402, %401 : vector<8x128xf32>
    %404 = arith.subf %398, %403 : vector<8x128xf32>
    %405 = arith.subf %404, %328 : vector<8x128xf32>
    %406 = arith.addf %405, %389 : vector<8x128xf32>
    %407 = arith.subf %62, %406 : vector<8x128xf32>
    %c0_81 = arith.constant 0 : index
    %c0_82 = arith.constant 0 : index
    %408 = vector.load %arg2[%c0_81, %c0_82] : memref<8x128xf32, #tpu.memory_space<vmem>>, vector<8x128xf32>
    tpu.vector_store %arg2[%c0_81, %c0_82], %407 {strides = array<i32>} : memref<8x128xf32, #tpu.memory_space<vmem>>, vector<8x128xf32>,
    return
  }
  func.func @transform_0(%arg0: i32) -> (i32, i32, i32) {
    %c0_i32 = arith.constant 0 : i32
    %c0_i32_0 = arith.constant 0 : i32
    %c0_i32_1 = arith.constant 0 : i32
    return %c0_i32, %arg0, %c0_i32_0 : i32, i32, i32
  }
  func.func @transform_1(%arg0: i32) -> (i32, i32) {
    %c0_i32 = arith.constant 0 : i32
    %c0_i32_0 = arith.constant 0 : i32
    return %arg0, %c0_i32 : i32, i32
  }
}

</mosaic_0001>

<llo_original>
// kernel: bingham_log_likelihood.1
$region0: #{bingham_log_likelihood.1}
  #allocation0 [shape = 'u32[]', space=smem, size = 0x4, offset = 0x4, fixed_abs, tag = 'smem constant byte address 0x4 - core index']
  #allocation1 [shape = 'u32[144,128]{1,0:T(1,128)}', space=vmem, size = 0x12000, scoped, tag = 'internal scratch']
  %s0 = inlined_call_operand.vmem [shape: f32[11,8,128], index: 0, kind: input, shape index: {}]
  %s1 = inlined_call_operand.vmem [shape: f32[8,128], index: 1, kind: output, shape index: {}]
  %s2 = sld [smem:[#allocation0]]
  $region14: #{bingham_log_likelihood.1} parent=0
    _
  %s4 = ssub.s32 1, %s2
  %s5 = scalar_select 0, %s4, %s2
  // Predicated region
  $region2: #{bingham_log_likelihood.1} parent=0 // pred_check
    _
  $region3: #{bingham_log_likelihood.1} parent=0 // pred_check_branch
    %7 = sbr.rel (0) target = $region5
  $region4: #{bingham_log_likelihood.1} parent=0 // pred_region
    _
  $region5: #{bingham_log_likelihood.1} parent=0 // pred_fallthru
    _
  %v8 = vld [vmem:[%s0] sm:$0xff]
  %s9 = scalar_lea.vmem %s0, 8
  %v10 = vld [vmem:[%s9] sm:$0xff]
  %s11 = scalar_lea.vmem %s0, 16
  %v12 = vld [vmem:[%s11] sm:$0xff]
  %s13 = scalar_lea.vmem %s0, 24
  %v14 = vld [vmem:[%s13] sm:$0xff]
  %s15 = scalar_lea.vmem %s0, 32
  %v16 = vld [vmem:[%s15] sm:$0xff]
  %v17 = vmin.f32 %v16, 0.0
  %s18 = scalar_lea.vmem %s0, 40
  %v19 = vld [vmem:[%s18] sm:$0xff]
  %v20 = vmin.f32 %v19, 0.0
  %s21 = scalar_lea.vmem %s0, 48
  %v22 = vld [vmem:[%s21] sm:$0xff]
  %v23 = vmin.f32 %v22, 0.0
  %s24 = scalar_lea.vmem %s0, 56
  %v25 = vld [vmem:[%s24] sm:$0xff]
  %s26 = scalar_lea.vmem %s0, 64
  %v27 = vld [vmem:[%s26] sm:$0xff]
  %s28 = scalar_lea.vmem %s0, 72
  %v29 = vld [vmem:[%s28] sm:$0xff]
  %s30 = scalar_lea.vmem %s0, 80
  %v31 = vld [vmem:[%s30] sm:$0xff]
  %v32 = vsub.f32 0.0, %v10
  %v33 = vmul.f32 %v32, %v25
  %v34 = vmul.f32 %v8, %v27
  %v35 = vadd.f32 %v33, %v34
  %v36 = vmul.f32 %v14, %v29
  %v37 = vadd.f32 %v35, %v36
  %v38 = vmul.f32 %v12, %v31
  %v39 = vsub.f32 %v37, %v38
  %v40 = vsub.f32 0.0, %v12
  %v41 = vmul.f32 %v40, %v25
  %v42 = vmul.f32 %v14, %v27
  %v43 = vsub.f32 %v41, %v42
  %v44 = vmul.f32 %v8, %v29
  %v45 = vadd.f32 %v43, %v44
  %v46 = vmul.f32 %v10, %v31
  %v47 = vadd.f32 %v45, %v46
  %v48 = vsub.f32 0.0, %v14
  %v49 = vmul.f32 %v48, %v25
  %v50 = vmul.f32 %v12, %v27
  %v51 = vadd.f32 %v49, %v50
  %v52 = vmul.f32 %v10, %v29
  %v53 = vsub.f32 %v51, %v52
  %v54 = vmul.f32 %v8, %v31
  %v55 = vadd.f32 %v53, %v54
  %v56 = vmul.f32 %v17, %v39
  %v57 = vmul.f32 %v56, %v39
  %v58 = vmul.f32 %v20, %v47
  %v59 = vmul.f32 %v58, %v47
  %v60 = vadd.f32 %v57, %v59
  %v61 = vmul.f32 %v23, %v55
  %v62 = vmul.f32 %v61, %v55
  %v63 = vadd.f32 %v60, %v62
  %v64 = vsub.f32 1.0, %v17
  %v65 = vsub.f32 1.0, %v20
  %v66 = vsub.f32 1.0, %v23
  %v67 = vrcp.pop 0.5
  %v68 = vsub.f32 %v64, 0.5
  %v69 = vrcp.pop %v68
  %v70 = vsub.f32 %v65, 0.5
  %v71 = vrcp.pop %v70
  %v72 = vsub.f32 %v66, 0.5
  %v73 = vrcp.pop %v72
  %v74 = vmul.f32 %v67, %v67
  %v75 = vmul.f32 %v69, %v69
  %v76 = vmul.f32 %v71, %v71
  %v77 = vmul.f32 %v73, %v73
  %v78 = vadd.f32 %v67, %v69
  %v79 = vadd.f32 %v78, %v71
  %v80 = vadd.f32 %v79, %v73
  %v81 = vmul.f32 %v80, 0.5
  %v82 = vsub.f32 %v81, 1.0
  %v83 = vadd.f32 %v74, %v75
  %v84 = vadd.f32 %v83, %v76
  %v85 = vadd.f32 %v84, %v77
  %v86 = vmul.f32 %v85, 0.5
  %v87 = vmul.f32 %v74, %v67
  %v88 = vmul.f32 %v75, %v69
  %v89 = vadd.f32 %v87, %v88
  %v90 = vmul.f32 %v76, %v71
  %v91 = vadd.f32 %v89, %v90
  %v92 = vmul.f32 %v77, %v73
  %v93 = vadd.f32 %v91, %v92
  %v94 = vmul.f32 %v86, 2.0
  %v95 = vmul.f32 %v94, %v86
  %v96 = vmul.f32 %v82, %v93
  %v97 = vsub.f32 %v95, %v96
  %v98 = vmul.f32 %v82, 2.0
  %v99 = vmul.f32 %v98, %v86
  %v100 = vrcp.pop %v97
  %v101 = vmul.f32 %v99, %v100
  %v102 = vsub.f32 0.5, %v101
  %v103 = vsub.f32 1.0, %v102
  %v104 = vrcp.pop %v103
  %v105 = vsub.f32 %v64, %v102
  %v106 = vrcp.pop %v105
  %v107 = vsub.f32 %v65, %v102
  %v108 = vrcp.pop %v107
  %v109 = vsub.f32 %v66, %v102
  %v110 = vrcp.pop %v109
  %v111 = vmul.f32 %v104, %v104
  %v112 = vmul.f32 %v106, %v106
  %v113 = vmul.f32 %v108, %v108
  %v114 = vmul.f32 %v110, %v110
  %v115 = vadd.f32 %v104, %v106
  %v116 = vadd.f32 %v115, %v108
  %v117 = vadd.f32 %v116, %v110
  %v118 = vmul.f32 %v117, 0.5
  %v119 = vsub.f32 %v118, 1.0
  %v120 = vadd.f32 %v111, %v112
  %v121 = vadd.f32 %v120, %v113
  %v122 = vadd.f32 %v121, %v114
  %v123 = vmul.f32 %v122, 0.5
  %v124 = vmul.f32 %v111, %v104
  %v125 = vmul.f32 %v112, %v106
  %v126 = vadd.f32 %v124, %v125
  %v127 = vmul.f32 %v113, %v108
  %v128 = vadd.f32 %v126, %v127
  %v129 = vmul.f32 %v114, %v110
  %v130 = vadd.f32 %v128, %v129
  %v131 = vmul.f32 %v123, 2.0
  %v132 = vmul.f32 %v131, %v123
  %v133 = vmul.f32 %v119, %v130
  %v134 = vsub.f32 %v132, %v133
  %v135 = vmul.f32 %v119, 2.0
  %v136 = vmul.f32 %v135, %v123
  %v137 = vrcp.pop %v134
  %v138 = vmul.f32 %v136, %v137
  %v139 = vsub.f32 %v102, %v138
  %v140 = vsub.f32 1.0, %v139
  %v141 = vrcp.pop %v140
  %v142 = vsub.f32 %v64, %v139
  %v143 = vrcp.pop %v142
  %v144 = vsub.f32 %v65, %v139
  %v145 = vrcp.pop %v144
  %v146 = vsub.f32 %v66, %v139
  %v147 = vrcp.pop %v146
  %v148 = vmul.f32 %v141, %v141
  %v149 = vmul.f32 %v143, %v143
  %v150 = vmul.f32 %v145, %v145
  %v151 = vmul.f32 %v147, %v147
  %v152 = vadd.f32 %v141, %v143
  %v153 = vadd.f32 %v152, %v145
  %v154 = vadd.f32 %v153, %v147
  %v155 = vmul.f32 %v154, 0.5
  %v156 = vsub.f32 %v155, 1.0
  %v157 = vadd.f32 %v148, %v149
  %v158 = vadd.f32 %v157, %v150
  %v159 = vadd.f32 %v158, %v151
  %v160 = vmul.f32 %v159, 0.5
  %v161 = vmul.f32 %v148, %v141
  %v162 = vmul.f32 %v149, %v143
  %v163 = vadd.f32 %v161, %v162
  %v164 = vmul.f32 %v150, %v145
  %v165 = vadd.f32 %v163, %v164
  %v166 = vmul.f32 %v151, %v147
  %v167 = vadd.f32 %v165, %v166
  %v168 = vmul.f32 %v160, 2.0
  %v169 = vmul.f32 %v168, %v160
  %v170 = vmul.f32 %v156, %v167
  %v171 = vsub.f32 %v169, %v170
  %v172 = vmul.f32 %v156, 2.0
  %v173 = vmul.f32 %v172, %v160
  %v174 = vrcp.pop %v171
  %v175 = vmul.f32 %v173, %v174
  %v176 = vsub.f32 %v139, %v175
  %v177 = vsub.f32 1.0, %v176
  %v178 = vrcp.pop %v177
  %v179 = vsub.f32 %v64, %v176
  %v180 = vrcp.pop %v179
  %v181 = vsub.f32 %v65, %v176
  %v182 = vrcp.pop %v181
  %v183 = vsub.f32 %v66, %v176
  %v184 = vrcp.pop %v183
  %v185 = vmul.f32 %v178, %v178
  %v186 = vmul.f32 %v180, %v180
  %v187 = vmul.f32 %v182, %v182
  %v188 = vmul.f32 %v184, %v184
  %v189 = vadd.f32 %v178, %v180
  %v190 = vadd.f32 %v189, %v182
  %v191 = vadd.f32 %v190, %v184
  %v192 = vmul.f32 %v191, 0.5
  %v193 = vsub.f32 %v192, 1.0
  %v194 = vadd.f32 %v185, %v186
  %v195 = vadd.f32 %v194, %v187
  %v196 = vadd.f32 %v195, %v188
  %v197 = vmul.f32 %v196, 0.5
  %v198 = vmul.f32 %v185, %v178
  %v199 = vmul.f32 %v186, %v180
  %v200 = vadd.f32 %v198, %v199
  %v201 = vmul.f32 %v187, %v182
  %v202 = vadd.f32 %v200, %v201
  %v203 = vmul.f32 %v188, %v184
  %v204 = vadd.f32 %v202, %v203
  %v205 = vmul.f32 %v197, 2.0
  %v206 = vmul.f32 %v205, %v197
  %v207 = vmul.f32 %v193, %v204
  %v208 = vsub.f32 %v206, %v207
  %v209 = vmul.f32 %v193, 2.0
  %v210 = vmul.f32 %v209, %v197
  %v211 = vrcp.pop %v208
  %v212 = vmul.f32 %v210, %v211
  %v213 = vsub.f32 %v176, %v212
  %v214 = vsub.f32 1.0, %v213
  %v215 = vrcp.pop %v214
  %v216 = vsub.f32 %v64, %v213
  %v217 = vrcp.pop %v216
  %v218 = vsub.f32 %v65, %v213
  %v219 = vrcp.pop %v218
  %v220 = vsub.f32 %v66, %v213
  %v221 = vrcp.pop %v220
  %v222 = vmul.f32 %v215, %v215
  %v223 = vmul.f32 %v217, %v217
  %v224 = vmul.f32 %v219, %v219
  %v225 = vmul.f32 %v221, %v221
  %v226 = vadd.f32 %v215, %v217
  %v227 = vadd.f32 %v226, %v219
  %v228 = vadd.f32 %v227, %v221
  %v229 = vmul.f32 %v228, 0.5
  %v230 = vsub.f32 %v229, 1.0
  %v231 = vadd.f32 %v222, %v223
  %v232 = vadd.f32 %v231, %v224
  %v233 = vadd.f32 %v232, %v225
  %v234 = vmul.f32 %v233, 0.5
  %v235 = vmul.f32 %v222, %v215
  %v236 = vmul.f32 %v223, %v217
  %v237 = vadd.f32 %v235, %v236
  %v238 = vmul.f32 %v224, %v219
  %v239 = vadd.f32 %v237, %v238
  %v240 = vmul.f32 %v225, %v221
  %v241 = vadd.f32 %v239, %v240
  %v242 = vmul.f32 %v234, 2.0
  %v243 = vmul.f32 %v242, %v234
  %v244 = vmul.f32 %v230, %v241
  %v245 = vsub.f32 %v243, %v244
  %v246 = vmul.f32 %v230, 2.0
  %v247 = vmul.f32 %v246, %v234
  %v248 = vrcp.pop %v245
  %v249 = vmul.f32 %v247, %v248
  %v250 = vsub.f32 %v213, %v249
  %v251 = vsub.f32 1.0, %v250
  %v252 = vsub.f32 %v64, %v250
  %v253 = vsub.f32 %v65, %v250
  %v254 = vsub.f32 %v66, %v250
  %v255 = vrcp.pop %v251
  %v256 = vmul.f32 %v251, %v255
  %v257 = vsub.f32 2.0, %v256
  %v258 = vmul.f32 %v255, %v257
  %v259 = vrcp.pop %v252
  %v260 = vmul.f32 %v252, %v259
  %v261 = vsub.f32 2.0, %v260
  %v262 = vmul.f32 %v259, %v261
  %v263 = vrcp.pop %v253
  %v264 = vmul.f32 %v253, %v263
  %v265 = vsub.f32 2.0, %v264
  %v266 = vmul.f32 %v263, %v265
  %v267 = vrcp.pop %v254
  %v268 = vmul.f32 %v254, %v267
  %v269 = vsub.f32 2.0, %v268
  %v270 = vmul.f32 %v267, %v269
  %v271 = vadd.f32 %v258, %v262
  %v272 = vadd.f32 %v271, %v266
  %v273 = vadd.f32 %v272, %v270
  %v274 = vmul.f32 %v273, 0.5
  %v275 = vmul.f32 %v258, %v258
  %v276 = vmul.f32 %v262, %v262
  %v277 = vadd.f32 %v275, %v276
  %v278 = vmul.f32 %v266, %v266
  %v279 = vadd.f32 %v277, %v278
  %v280 = vmul.f32 %v270, %v270
  %v281 = vadd.f32 %v279, %v280
  %v282 = vmul.f32 %v281, 0.5
  %v283 = vsub.f32 %v274, 1.0
  %v284 = vrcp.pop %v282
  %v285 = vmul.f32 %v283, %v284
  %v286 = vsub.f32 %v250, %v285
  %v287 = vadd.f32 %v251, %v285
  %v288 = vadd.f32 %v252, %v285
  %v289 = vadd.f32 %v253, %v285
  %v290 = vadd.f32 %v254, %v285
  %v291 = vmul.f32 %v287, %v258
  %v292 = vsub.f32 2.0, %v291
  %v293 = vmul.f32 %v258, %v292
  %v294 = vmul.f32 %v288, %v262
  %v295 = vsub.f32 2.0, %v294
  %v296 = vmul.f32 %v262, %v295
  %v297 = vmul.f32 %v289, %v266
  %v298 = vsub.f32 2.0, %v297
  %v299 = vmul.f32 %v266, %v298
  %v300 = vmul.f32 %v290, %v270
  %v301 = vsub.f32 2.0, %v300
  %v302 = vmul.f32 %v270, %v301
  %v303 = vmul.f32 %v293, %v293
  %v304 = vmul.f32 %v296, %v296
  %v305 = vmul.f32 %v299, %v299
  %v306 = vmul.f32 %v302, %v302
  %v307 = vadd.f32 %v303, %v304
  %v308 = vadd.f32 %v307, %v305
  %v309 = vadd.f32 %v308, %v306
  %v310 = vmul.f32 %v309, 0.5
  %v311 = vmul.f32 %v303, %v293
  %v312 = vmul.f32 %v304, %v296
  %v313 = vadd.f32 %v311, %v312
  %v314 = vmul.f32 %v305, %v299
  %v315 = vadd.f32 %v313, %v314
  %v316 = vmul.f32 %v306, %v302
  %v317 = vadd.f32 %v315, %v316
  %v318 = vmul.f32 %v303, %v303
  %v319 = vmul.f32 %v304, %v304
  %v320 = vadd.f32 %v318, %v319
  %v321 = vmul.f32 %v305, %v305
  %v322 = vadd.f32 %v320, %v321
  %v323 = vmul.f32 %v306, %v306
  %v324 = vadd.f32 %v322, %v323
  %v325 = vmul.f32 %v324, 3.0
  %v326 = vrcp.pop %v310
  %v327 = vmul.f32 %v310, %v326
  %v328 = vsub.f32 2.0, %v327
  %v329 = vmul.f32 %v326, %v328
  %v330 = vmul.f32 %v317, %v317
  %v331 = vmul.f32 %v329, %v329
  %v332 = vmul.f32 %v331, %v329
  %v333 = vmul.f32 %v330, %v332
  %v334 = vmul.f32 %v325, %v331
  %v335 = vmul.f32 %v334, 0.125
  %v336 = vmul.f32 %v333, 0.20833333
  %v337 = vsub.f32 %v335, %v336
  %v338 = vmul.f32 %v287, %v288
  %v339 = vmul.f32 %v338, %v289
  %v340 = vmul.f32 %v339, %v290
  %v341 = vmul.f32 %v340, %v310
  %v342 = vlog2.pop %v341
  %v343 = vmul.f32 %v342, 0.6931472
  %v344 = vmul.f32 %v343, 0.5
  %v345 = vsub.f32 3.0636685, %v344
  %v346 = vmul.f32 %v64, %v65
  %v347 = vmul.f32 %v346, %v66
  %v348 = vlog2.pop %v347
  %v349 = vmul.f32 %v348, 0.6931472
  %v350 = vmul.f32 %v349, 0.5
  %v351 = vsub.f32 %v345, %v350
  %v352 = vsub.f32 %v351, %v286
  %v353 = vadd.f32 %v352, %v337
  %v354 = vsub.f32 %v63, %v353
  %355 = vst [vmem:[%s1] sm:$0xff] %v354
  // Predicated region
  $region6: #{bingham_log_likelihood.1} parent=0 // pred_check
    _
  $region7: #{bingham_log_likelihood.1} parent=0 // pred_check_branch
    %357 = sbr.rel (0) target = $region9
  $region8: #{bingham_log_likelihood.1} parent=0 // pred_region
    _
  $region9: #{bingham_log_likelihood.1} parent=0 // pred_fallthru
    _
  // Predicated region
  $region10: #{bingham_log_likelihood.1} parent=0 // pred_check
    _
  $region11: #{bingham_log_likelihood.1} parent=0 // pred_check_branch
    %359 = sbr.rel (0) target = $region13
  $region12: #{bingham_log_likelihood.1} parent=0 // pred_region
    _
  $region13: #{bingham_log_likelihood.1} parent=0 // pred_fallthru
    _

</llo_original>
